<compile_context>
chip_gen: v6e
topology: v6e:2x2x1
jax: 0.10.0
libtpu: 0.0.40
codegen_flags: <defaults>
</compile_context>

<pallas_src>
import functools

import jax
import jax.numpy as jnp
from jax.experimental import pallas as pl
from jax.experimental.pallas import tpu as pltpu


def _weighted_avg_kernel(w_ref, x_ref, o_ref):
    # w_ref: (N,)        float32 scalars in SMEM
    # x_ref: (TB, N, TD) input tile in VMEM
    # o_ref: (TB, TD)    output tile in VMEM
    n = x_ref.shape[1]
    # Unrolled scalar-broadcast FMA chain over the n_inputs axis (f32 accum).
    acc = x_ref[:, 0, :].astype(jnp.float32) * w_ref[0]
    for i in range(1, n):
        acc = acc + x_ref[:, i, :].astype(jnp.float32) * w_ref[i]
    o_ref[...] = acc.astype(o_ref.dtype)


def _round_up(x, m):
    return ((x + m - 1) // m) * m


@functools.partial(jax.jit, static_argnames=("tb", "td"))
def linear_weighted_avg(inputs, weights, *, tb=None, td=None):
    """inputs: (B, N, D), weights: (N,) -> (B, D) == einsum('xyz,y->xz')."""
    B, N, D = inputs.shape

    # Tile sizes: lane dim (D) a multiple of 128, sublane dim (B) a multiple of
    # 8. 512-lane tiles amortize the ~0.35 us per-grid-step overhead while the
    # double-buffered input block (~2 * TB * max(N,8) * TD * 4 B ~= 4 MiB for
    # TB=128, TD=512, small N) stays far below the 32 MiB scoped VMEM budget,
    # which is safe on v5e/v6e (128 MiB VMEM) and on v7x (64 MiB VMEM).
    if td is None:
        td = min(_round_up(D, 128), 512)
    if tb is None:
        tb = min(_round_up(B, 8), 128)

    nb = pl.cdiv(B, tb)
    nd = pl.cdiv(D, td)
    Bp, Dp = nb * tb, nd * td

    x = inputs
    if (Bp, Dp) != (B, D):
        x = jnp.pad(x, ((0, Bp - B), (0, 0), (0, Dp - D)))

    # Weights as float32 scalars in SMEM (the accumulation dtype), not a VMEM tile.
    w = weights.astype(jnp.float32)

    out = pl.pallas_call(
        _weighted_avg_kernel,
        out_shape=jax.ShapeDtypeStruct((Bp, Dp), inputs.dtype),
        grid=(nb, nd),
        in_specs=[
            pl.BlockSpec(memory_space=pltpu.MemorySpace.SMEM),   # weights (whole array)
            pl.BlockSpec((tb, N, td), lambda i, j: (i, 0, j)),   # input tile
        ],
        out_specs=pl.BlockSpec((tb, td), lambda i, j: (i, j)),
        compiler_params=pltpu.CompilerParams(
            # Both grid axes are independent (no reduction axis in the grid),
            # so they can be sharded across v7x's two TensorCores.
            dimension_semantics=("parallel", "parallel"),
            vmem_limit_bytes=32 * 1024 * 1024,
        ),
    )(w, x)

    # Drop padding (no-op when B and D are already tile-aligned).
    return out[:B, :D]


if __name__ == "__main__":
    key = jax.random.PRNGKey(0)
    k_x, k_w = jax.random.split(key)

    batch, n_inputs, dimension = 2, 4, 32
    x = jax.random.normal(k_x, (batch, n_inputs, dimension), dtype=jnp.float32)
    # deterministic init of the learnable weights (torch.randn equivalent)
    w = jax.random.normal(k_w, (n_inputs,), dtype=jnp.float32)

    out = jax.block_until_ready(linear_weighted_avg(x, w))

    # reference check against plain-JAX einsum
    ref = jnp.einsum('xyz,y->xz', x, w)
    assert out.shape == (batch, dimension)
    assert jnp.allclose(out, ref, atol=1e-5, rtol=1e-5)

    print("KERNEL_OK")
</pallas_src>

<mosaic_0001>
module attributes {stable_mosaic.version = 11 : i64} {
  func.func @_weighted_avg_kernel(%arg0: i32, %arg1: i32, %arg2: memref<4xf32, #tpu.memory_space<smem>>, %arg3: memref<8x4x128xf32, #tpu.memory_space<vmem>>, %arg4: memref<8x128xf32, #tpu.memory_space<vmem>>) attributes {dimension_semantics = [#tpu.dimension_semantics<parallel>, #tpu.dimension_semantics<parallel>], iteration_bounds = array<i64: 1, 1>, scalar_prefetch = 0 : i64, scratch_operands = 0 : i64, tpu.core_type = #tpu.core_type<tc>, window_params = [{transform_indices = @transform_0, window_bounds = array<i64: 4>}, {transform_indices = @transform_1, window_bounds = array<i64: 8, 4, 128>}, {transform_indices = @transform_2, window_bounds = array<i64: 8, 128>}]} {
    %c0 = arith.constant 0 : index
    %c0_0 = arith.constant 0 : index
    %c0_1 = arith.constant 0 : index
    %0 = vector.load %arg3[%c0, %c0_0, %c0_1] : memref<8x4x128xf32, #tpu.memory_space<vmem>>, vector<8x1x128xf32>
    %1 = vector.shape_cast %0 : vector<8x1x128xf32> to vector<8x128xf32>
    %c0_2 = arith.constant 0 : index
    %2 = memref.load %arg2[%c0_2] : memref<4xf32, #tpu.memory_space<smem>>
    %3 = vector.broadcast %2 : f32 to vector<8x128xf32>
    %4 = arith.mulf %1, %3 : vector<8x128xf32>
    %c0_3 = arith.constant 0 : index
    %c1 = arith.constant 1 : index
    %c0_4 = arith.constant 0 : index
    %5 = vector.load %arg3[%c0_3, %c1, %c0_4] : memref<8x4x128xf32, #tpu.memory_space<vmem>>, vector<8x1x128xf32>
    %6 = vector.shape_cast %5 : vector<8x1x128xf32> to vector<8x128xf32>
    %c1_5 = arith.constant 1 : index
    %7 = memref.load %arg2[%c1_5] : memref<4xf32, #tpu.memory_space<smem>>
    %8 = vector.broadcast %7 : f32 to vector<8x128xf32>
    %9 = arith.mulf %6, %8 : vector<8x128xf32>
    %10 = arith.addf %4, %9 : vector<8x128xf32>
    %c0_6 = arith.constant 0 : index
    %c2 = arith.constant 2 : index
    %c0_7 = arith.constant 0 : index
    %11 = vector.load %arg3[%c0_6, %c2, %c0_7] : memref<8x4x128xf32, #tpu.memory_space<vmem>>, vector<8x1x128xf32>
    %12 = vector.shape_cast %11 : vector<8x1x128xf32> to vector<8x128xf32>
    %c2_8 = arith.constant 2 : index
    %13 = memref.load %arg2[%c2_8] : memref<4xf32, #tpu.memory_space<smem>>
    %14 = vector.broadcast %13 : f32 to vector<8x128xf32>
    %15 = arith.mulf %12, %14 : vector<8x128xf32>
    %16 = arith.addf %10, %15 : vector<8x128xf32>
    %c0_9 = arith.constant 0 : index
    %c3 = arith.constant 3 : index
    %c0_10 = arith.constant 0 : index
    %17 = vector.load %arg3[%c0_9, %c3, %c0_10] : memref<8x4x128xf32, #tpu.memory_space<vmem>>, vector<8x1x128xf32>
    %18 = vector.shape_cast %17 : vector<8x1x128xf32> to vector<8x128xf32>
    %c3_11 = arith.constant 3 : index
    %19 = memref.load %arg2[%c3_11] : memref<4xf32, #tpu.memory_space<smem>>
    %20 = vector.broadcast %19 : f32 to vector<8x128xf32>
    %21 = arith.mulf %18, %20 : vector<8x128xf32>
    %22 = arith.addf %16, %21 : vector<8x128xf32>
    %c0_12 = arith.constant 0 : index
    %c0_13 = arith.constant 0 : index
    %23 = vector.load %arg4[%c0_12, %c0_13] : memref<8x128xf32, #tpu.memory_space<vmem>>, vector<8x128xf32>
    tpu.vector_store %arg4[%c0_12, %c0_13], %22 {strides = array<i32>} : memref<8x128xf32, #tpu.memory_space<vmem>>, vector<8x128xf32>,
    return
  }
  func.func @transform_0(%arg0: i32, %arg1: i32) -> i32 {
    %c0_i32 = arith.constant 0 : i32
    %c0_i32_0 = arith.constant 0 : i32
    return %c0_i32 : i32
  }
  func.func @transform_1(%arg0: i32, %arg1: i32) -> (i32, i32, i32) {
    %c0_i32 = arith.constant 0 : i32
    %c0_i32_0 = arith.constant 0 : i32
    return %arg0, %c0_i32, %arg1 : i32, i32, i32
  }
  func.func @transform_2(%arg0: i32, %arg1: i32) -> (i32, i32) {
    %c0_i32 = arith.constant 0 : i32
    return %arg0, %arg1 : i32, i32
  }
}

</mosaic_0001>

<llo_original>
// kernel: linear_weighted_avg.1
$region0: #{linear_weighted_avg.1}
  #allocation0 [shape = 'u32[]', space=smem, size = 0x4, offset = 0x4, fixed_abs, tag = 'smem constant byte address 0x4 - core index']
  #allocation1 [shape = 'u32[144,128]{1,0:T(1,128)}', space=vmem, size = 0x12000, scoped, tag = 'internal scratch']
  %s0 = inlined_call_operand.vmem [shape: f32[4], index: 0, kind: input, shape index: {}]
  %s1 = inlined_call_operand.vmem [shape: f32[8,4,128], index: 1, kind: input, shape index: {}]
  %s2 = inlined_call_operand.vmem [shape: f32[8,128], index: 2, kind: output, shape index: {}]
  %s3 = sld [smem:[#allocation0]]
  $region22: #{linear_weighted_avg.1} parent=0
    _
  %s5 = ssub.s32 1, %s3
  %s6 = scalar_select 0, %s5, %s3
  $region1: #{linear_weighted_avg.1} parent=0
    #allocation2 [shape = 'u8[512]{0}', space=smem, size = 0x200, scoped, tag = 'input window, operand 0, single buffered']
    #allocation3 [shape = 's32[1]{0}', space=sflag, size = 0x4, scoped, tag = 'scoped memory for linear_weighted_avg.1']
    %7 = vsyncpa [#allocation3], 0
    // Predicated region
    $region2: #{linear_weighted_avg.1} parent=1 // pred_check
      _
    $region3: #{linear_weighted_avg.1} parent=1 // pred_check_branch
      %9 = sbr.rel (0) target = $region5
    $region4: #{linear_weighted_avg.1} parent=1 // pred_region
      %s11 = ssub.s32 16, 16
      %12 = vsyncadd [#allocation3], %s11
      %s14 = sshll.u32 %s0, 4
      %s15 = int_to_ptr.vmem [resolvable:$true] %s14
      %17 = dma.vmem_to_smem %s15, 16, [#allocation2], [#allocation3]
    $region5: #{linear_weighted_avg.1} parent=1 // pred_fallthru
      _
    // Predicated region
    $region6: #{linear_weighted_avg.1} parent=1 // pred_check
      _
    $region7: #{linear_weighted_avg.1} parent=1 // pred_check_branch
      %19 = sbr.rel (0) target = $region9
    $region8: #{linear_weighted_avg.1} parent=1 // pred_region
      _
    $region9: #{linear_weighted_avg.1} parent=1 // pred_fallthru
      _
    // Predicated region
    $region10: #{linear_weighted_avg.1} parent=1 // pred_check
      _
    $region11: #{linear_weighted_avg.1} parent=1 // pred_check_branch
      %21 = sbr.rel (0) target = $region13
    $region12: #{linear_weighted_avg.1} parent=1 // pred_region
      %22 = dma.done [#allocation3], 16
    $region13: #{linear_weighted_avg.1} parent=1 // pred_fallthru
      _
    %23 = sfence
    %v24 = vld [vmem:[%s1] sm:$0x1]
    %v25 = vld [vmem:[%s1 + $0x4] sm:$0x1]
    %v26 = vld [vmem:[%s1 + $0x8] sm:$0x1]
    %v27 = vld [vmem:[%s1 + $0xc] sm:$0x1]
    %v28 = vld [vmem:[%s1 + $0x10] sm:$0x1]
    %v29 = vld [vmem:[%s1 + $0x14] sm:$0x1]
    %v30 = vld [vmem:[%s1 + $0x18] sm:$0x1]
    %v31 = vld [vmem:[%s1 + $0x1c] sm:$0x1]
    %s32 = sld [smem:[#allocation2]]
    %v33 = vstv %s32
    %v34 = vmul.f32 %v24, %v33
    %v35 = vmul.f32 %v25, %v33
    %v36 = vmul.f32 %v26, %v33
    %v37 = vmul.f32 %v27, %v33
    %v38 = vmul.f32 %v28, %v33
    %v39 = vmul.f32 %v29, %v33
    %v40 = vmul.f32 %v30, %v33
    %v41 = vmul.f32 %v31, %v33
    %v42 = vld [vmem:[%s1 + $0x1] sm:$0x1]
    %v43 = vld [vmem:[%s1 + $0x5] sm:$0x1]
    %v44 = vld [vmem:[%s1 + $0x9] sm:$0x1]
    %v45 = vld [vmem:[%s1 + $0xd] sm:$0x1]
    %v46 = vld [vmem:[%s1 + $0x11] sm:$0x1]
    %v47 = vld [vmem:[%s1 + $0x15] sm:$0x1]
    %v48 = vld [vmem:[%s1 + $0x19] sm:$0x1]
    %v49 = vld [vmem:[%s1 + $0x1d] sm:$0x1]
    %s50 = sld [smem:[#allocation2 + $0x1]]
    %v51 = vstv %s50
    %v52 = vmul.f32 %v42, %v51
    %v53 = vmul.f32 %v43, %v51
    %v54 = vmul.f32 %v44, %v51
    %v55 = vmul.f32 %v45, %v51
    %v56 = vmul.f32 %v46, %v51
    %v57 = vmul.f32 %v47, %v51
    %v58 = vmul.f32 %v48, %v51
    %v59 = vmul.f32 %v49, %v51
    %v60 = vadd.f32 %v34, %v52
    %v61 = vadd.f32 %v35, %v53
    %v62 = vadd.f32 %v36, %v54
    %v63 = vadd.f32 %v37, %v55
    %v64 = vadd.f32 %v38, %v56
    %v65 = vadd.f32 %v39, %v57
    %v66 = vadd.f32 %v40, %v58
    %v67 = vadd.f32 %v41, %v59
    %v68 = vld [vmem:[%s1 + $0x2] sm:$0x1]
    %v69 = vld [vmem:[%s1 + $0x6] sm:$0x1]
    %v70 = vld [vmem:[%s1 + $0xa] sm:$0x1]
    %v71 = vld [vmem:[%s1 + $0xe] sm:$0x1]
    %v72 = vld [vmem:[%s1 + $0x12] sm:$0x1]
    %v73 = vld [vmem:[%s1 + $0x16] sm:$0x1]
    %v74 = vld [vmem:[%s1 + $0x1a] sm:$0x1]
    %v75 = vld [vmem:[%s1 + $0x1e] sm:$0x1]
    %s76 = sld [smem:[#allocation2 + $0x2]]
    %v77 = vstv %s76
    %v78 = vmul.f32 %v68, %v77
    %v79 = vmul.f32 %v69, %v77
    %v80 = vmul.f32 %v70, %v77
    %v81 = vmul.f32 %v71, %v77
    %v82 = vmul.f32 %v72, %v77
    %v83 = vmul.f32 %v73, %v77
    %v84 = vmul.f32 %v74, %v77
    %v85 = vmul.f32 %v75, %v77
    %v86 = vadd.f32 %v60, %v78
    %v87 = vadd.f32 %v61, %v79
    %v88 = vadd.f32 %v62, %v80
    %v89 = vadd.f32 %v63, %v81
    %v90 = vadd.f32 %v64, %v82
    %v91 = vadd.f32 %v65, %v83
    %v92 = vadd.f32 %v66, %v84
    %v93 = vadd.f32 %v67, %v85
    %v94 = vld [vmem:[%s1 + $0x3] sm:$0x1]
    %v95 = vld [vmem:[%s1 + $0x7] sm:$0x1]
    %v96 = vld [vmem:[%s1 + $0xb] sm:$0x1]
    %v97 = vld [vmem:[%s1 + $0xf] sm:$0x1]
    %v98 = vld [vmem:[%s1 + $0x13] sm:$0x1]
    %v99 = vld [vmem:[%s1 + $0x17] sm:$0x1]
    %v100 = vld [vmem:[%s1 + $0x1b] sm:$0x1]
    %v101 = vld [vmem:[%s1 + $0x1f] sm:$0x1]
    %s102 = sld [smem:[#allocation2 + $0x3]]
    %v103 = vstv %s102
    %v104 = vmul.f32 %v94, %v103
    %v105 = vmul.f32 %v95, %v103
    %v106 = vmul.f32 %v96, %v103
    %v107 = vmul.f32 %v97, %v103
    %v108 = vmul.f32 %v98, %v103
    %v109 = vmul.f32 %v99, %v103
    %v110 = vmul.f32 %v100, %v103
    %v111 = vmul.f32 %v101, %v103
    %v112 = vadd.f32 %v86, %v104
    %v113 = vadd.f32 %v87, %v105
    %v114 = vadd.f32 %v88, %v106
    %v115 = vadd.f32 %v89, %v107
    %v116 = vadd.f32 %v90, %v108
    %v117 = vadd.f32 %v91, %v109
    %v118 = vadd.f32 %v92, %v110
    %v119 = vadd.f32 %v93, %v111
    %v128 = vrot.slane %v113, 7
    %vm129 = vcmask 1041409
    %v130 = vsel %vm129, %v128, %v112
    %v131 = vrot.slane %v114, 6
    %vm132 = vcmask 1042434
    %v133 = vsel %vm132, %v131, %v130
    %v134 = vrot.slane %v115, 5
    %vm135 = vcmask 1043459
    %v136 = vsel %vm135, %v134, %v133
    %v137 = vrot.slane %v116, 4
    %vm138 = vcmask 1044484
    %v139 = vsel %vm138, %v137, %v136
    %v140 = vrot.slane %v117, 3
    %vm141 = vcmask 1045509
    %v142 = vsel %vm141, %v140, %v139
    %v143 = vrot.slane %v118, 2
    %vm144 = vcmask 1046534
    %v145 = vsel %vm144, %v143, %v142
    %v146 = vrot.slane %v119, 1
    %vm147 = vcmask 1047559
    %v148 = vsel %vm147, %v146, %v145
    %150 = vst [vmem:[%s2] sm:$0xff] %v148
    // Predicated region
    $region14: #{linear_weighted_avg.1} parent=1 // pred_check
      _
    $region15: #{linear_weighted_avg.1} parent=1 // pred_check_branch
      %152 = sbr.rel (0) target = $region17
    $region16: #{linear_weighted_avg.1} parent=1 // pred_region
      _
    $region17: #{linear_weighted_avg.1} parent=1 // pred_fallthru
      _
    // Predicated region
    $region18: #{linear_weighted_avg.1} parent=1 // pred_check
      _
    $region19: #{linear_weighted_avg.1} parent=1 // pred_check_branch
      %154 = sbr.rel (0) target = $region21
    $region20: #{linear_weighted_avg.1} parent=1 // pred_region
      _
    $region21: #{linear_weighted_avg.1} parent=1 // pred_fallthru
      _
    %155 = vsyncpa [#allocation3], 1

</llo_original>
